<compile_context>
chip_gen: v5e
topology: v5e:2x2
jax: 0.10.0
libtpu: 0.0.40
codegen_flags: <defaults>
</compile_context>

<pallas_src>
import functools
import math

import jax
import jax.numpy as jnp
from jax.experimental import pallas as pl
from jax.experimental.pallas import tpu as pltpu


def _round_up(x, m):
    return ((x + m - 1) // m) * m


# ---------------------------------------------------------------------------
# Tile / VMEM sizing.
# ---------------------------------------------------------------------------
def _vmem_bytes_estimate(tb, D, emb_itemsize):
    stream = 2 * tb * D * emb_itemsize            # double-buffered emb blocks
    interm = 8 * tb * D                           # f32 x + h1 + h2 + h3 live values
    weights = 8 * (D * (D // 2) + (D // 2) * (D // 4)
                   + (D // 4) * (D // 8) + 2 * D)
    return stream + interm + weights + (1 << 20)  # + slack (small blocks, pipelining)


def _pick_tile(B, D, emb_itemsize, tile=None):
    if tile is None:
        # ~2 MiB of streamed embedding per grid step hides the ~0.35 us per-step
        # pipeline overhead even at v7x's 3.2 TB/s HBM bandwidth (v5e/v6e need less).
        tile = (2 * 1024 * 1024) // max(1, D * emb_itemsize)
    tile = max(8, min(int(tile), 4096))
    # Shrink until comfortably inside the 32 MiB default scoped-VMEM limit
    # (valid headroom on all generations, including v7x's 64 MiB physical VMEM).
    while tile > 8 and _vmem_bytes_estimate(tile, D, emb_itemsize) > 24 * 1024 * 1024:
        tile //= 2
    tile = _round_up(min(tile, _round_up(B, 8)), 8)
    return tile


def _mxu_params(params, D):
    """Cast the matmul weights to bf16 only when large D makes the kernel MXU-bound."""
    if D >= 512:
        w1, b1, w2, b2, w3, b3, w4t, b4 = params
        bf = jnp.bfloat16
        return (w1.astype(bf), b1, w2.astype(bf), b2, w3.astype(bf), b3, w4t, b4), bf
    return params, jnp.float32


def _weight_specs(params):
    # Full-array block + constant index_map -> weights stay VMEM-resident.
    return [pl.BlockSpec(p.shape, lambda i: (0, 0)) for p in params]


def _mlp_flops(B, D):
    return 2 * B * (D * (D // 2) + (D // 2) * (D // 4)
                    + (D // 4) * (D // 8) + (D // 8))


# ---------------------------------------------------------------------------
# Shared MLP body (operates on loaded VMEM tiles; f32 accumulation on MXU).
# ---------------------------------------------------------------------------
def _mlp(x, w1, b1, w2, b2, w3, b3, w4t, b4, mxu_dtype):
    h = jnp.dot(x.astype(mxu_dtype), w1, preferred_element_type=jnp.float32) + b1
    h = jnp.maximum(h, 0.1 * h)                                   # LeakyReLU(0.1)
    h = jnp.dot(h.astype(mxu_dtype), w2, preferred_element_type=jnp.float32) + b2
    h = jnp.maximum(h, 0.1 * h)
    h = jnp.dot(h.astype(mxu_dtype), w3, preferred_element_type=jnp.float32) + b3
    h = jnp.maximum(h, 0.1 * h)
    # Final Linear has out_dim=1: multiply + lane-reduce (VPU/XLU) instead of a
    # degenerate N=1 MXU matmul.
    return jnp.sum(h * w4t, axis=-1, keepdims=True) + b4          # (tb, 1) f32


# ---------------------------------------------------------------------------
# Kernel 1: fused MLP + masked squared-error -> per-tile SSE partial.
# ---------------------------------------------------------------------------
def _loss_kernel(batch, tile, mxu_dtype,
                 emb_ref, lab_ref,
                 w1_ref, b1_ref, w2_ref, b2_ref, w3_ref, b3_ref, w4t_ref, b4_ref,
                 sse_ref):
    i = pl.program_id(0)
    out = _mlp(emb_ref[...],
               w1_ref[...], b1_ref[...], w2_ref[...], b2_ref[...],
               w3_ref[...], b3_ref[...], w4t_ref[...], b4_ref[...],
               mxu_dtype)                                          # (tb, 1)

    # Mask rows past the true batch (the ragged last tile reads unspecified
    # data; the select also kills any NaN/Inf coming from those rows).
    row = jax.lax.broadcasted_iota(jnp.int32, out.shape, 0) + i * tile
    err = jnp.where(row < batch, out - lab_ref[...].astype(jnp.float32), 0.0)
    part = jnp.sum(err * err, axis=0, keepdims=True)               # (1, 1)

    # Each step owns its own (1, 8, 128) output block -> no carried scratch,
    # grid axis can be "parallel" (megacore on v7x).
    sse_ref[...] = jnp.broadcast_to(part.reshape(1, 1, 1), sse_ref.shape)


# ---------------------------------------------------------------------------
# Kernel 2: MLP -> per-row predictions.
# ---------------------------------------------------------------------------
def _pred_kernel(mxu_dtype,
                 emb_ref,
                 w1_ref, b1_ref, w2_ref, b2_ref, w3_ref, b3_ref, w4t_ref, b4_ref,
                 pred_ref):
    pred_ref[...] = _mlp(emb_ref[...],
                         w1_ref[...], b1_ref[...], w2_ref[...], b2_ref[...],
                         w3_ref[...], b3_ref[...], w4t_ref[...], b4_ref[...],
                         mxu_dtype)


# ---------------------------------------------------------------------------
# Host wrappers.
# ---------------------------------------------------------------------------
def gender_regression_loss(ents_emb, labels, params, *, tile=None):
    """Fused MLP + MSE over the batch. Returns (rmse, mse) scalars."""
    B, D = ents_emb.shape
    itemsize = ents_emb.dtype.itemsize
    tb = _pick_tile(B, D, itemsize, tile)
    nb = pl.cdiv(B, tb)
    vmem_limit = min(64 * 1024 * 1024,
                     max(32 * 1024 * 1024,
                         int(1.25 * _vmem_bytes_estimate(tb, D, itemsize))))
    kparams, mxu_dtype = _mxu_params(params, D)

    lab2d = labels.reshape(B, 1)
    weight_bytes = sum(int(p.size) * p.dtype.itemsize for p in kparams)
    bytes_accessed = int(ents_emb.size * itemsize + lab2d.size * 4
                         + nb * 8 * 128 * 4 + weight_bytes)

    partials = pl.pallas_call(
        functools.partial(_loss_kernel, B, tb, mxu_dtype),
        out_shape=jax.ShapeDtypeStruct((nb, 8, 128), jnp.float32),
        grid=(nb,),
        in_specs=[pl.BlockSpec((tb, D), lambda i: (i, 0)),   # embeddings (streamed, native dtype)
                  pl.BlockSpec((tb, 1), lambda i: (i, 0))]   # labels (streamed)
                 + _weight_specs(kparams),
        out_specs=pl.BlockSpec((1, 8, 128), lambda i: (i, 0, 0)),
        compiler_params=pltpu.CompilerParams(
            dimension_semantics=("parallel",),               # no carried state
            vmem_limit_bytes=vmem_limit),
        cost_estimate=pl.CostEstimate(flops=int(_mlp_flops(B, D)), transcendentals=0,
                                      bytes_accessed=bytes_accessed),
    )(ents_emb, lab2d, *kparams)

    # Tiny nb-element reduce + /B + sqrt stay in plain JAX.
    sse = jnp.sum(partials[:, 0, 0])
    mse = sse / B
    return jnp.sqrt(mse), mse


def gender_regression_predictions(ents_emb, params, *, tile=None):
    """MLP forward only. Returns per-row predictions, shape (B,)."""
    B, D = ents_emb.shape
    itemsize = ents_emb.dtype.itemsize
    tb = _pick_tile(B, D, itemsize, tile)
    nb = pl.cdiv(B, tb)
    vmem_limit = min(64 * 1024 * 1024,
                     max(32 * 1024 * 1024,
                         int(1.25 * _vmem_bytes_estimate(tb, D, itemsize))))
    kparams, mxu_dtype = _mxu_params(params, D)

    weight_bytes = sum(int(p.size) * p.dtype.itemsize for p in kparams)
    bytes_accessed = int(ents_emb.size * itemsize + B * 4 + weight_bytes)

    pred = pl.pallas_call(
        functools.partial(_pred_kernel, mxu_dtype),
        out_shape=jax.ShapeDtypeStruct((B, 1), jnp.float32),
        grid=(nb,),
        in_specs=[pl.BlockSpec((tb, D), lambda i: (i, 0))] + _weight_specs(kparams),
        # (tb, 1) column block: HBM writeback of a column tile of a (B, 1)
        # array is fully contiguous; a lane relayout would cost about what the
        # masked VMEM stores cost, so it is intentionally not done here.
        out_specs=pl.BlockSpec((tb, 1), lambda i: (i, 0)),
        compiler_params=pltpu.CompilerParams(
            dimension_semantics=("parallel",),
            vmem_limit_bytes=vmem_limit),
        cost_estimate=pl.CostEstimate(flops=int(_mlp_flops(B, D)), transcendentals=0,
                                      bytes_accessed=bytes_accessed),
    )(ents_emb, *kparams)

    return pred[:, 0]


# ---------------------------------------------------------------------------
# Module-equivalent wrapper with deterministic parameter init.
# ---------------------------------------------------------------------------
class GenderRegressionOnedim:
    def __init__(self, embed_dim, inds, key):
        embed_dim = int(embed_dim)
        self.embed_dim = embed_dim
        self.out_dim = 1
        self.users_sensitive = jnp.asarray(inds, jnp.float32)

        dims = [embed_dim, embed_dim // 2, embed_dim // 4, embed_dim // 8, 1]
        keys = jax.random.split(key, 8)
        params = []
        for li in range(4):
            fan_in, fan_out = dims[li], dims[li + 1]
            lim = 1.0 / math.sqrt(fan_in)   # PyTorch nn.Linear default init
            w = jax.random.uniform(keys[2 * li], (fan_in, fan_out), jnp.float32, -lim, lim)
            b = jax.random.uniform(keys[2 * li + 1], (1, fan_out), jnp.float32, -lim, lim)
            params.append((w, b))
        (self.w1, self.b1), (self.w2, self.b2), (self.w3, self.b3), (w4, b4) = params
        self.w4t = w4.T       # (1, embed_dim // 8) for the lane-reduce last layer
        self.b4 = b4          # (1, 1)

    def _params(self):
        return (self.w1, self.b1, self.w2, self.b2,
                self.w3, self.b3, self.w4t, self.b4)

    def forward(self, ents_emb, ents, return_loss=False, tile=None):
        # TODO(synk): torch.cuda.FloatTensor / Variable device plumbing has no
        # kernel equivalent; the (tiny) label gather is plain-JAX glue.
        A_labels = self.users_sensitive[ents]
        if return_loss:
            rmse, _ = gender_regression_loss(ents_emb, A_labels, self._params(),
                                             tile=tile)
            return rmse                       # loss1 = sqrt(MSE(output, labels))
        pred = gender_regression_predictions(ents_emb, self._params(), tile=tile)
        return pred, A_labels                 # (output.squeeze(), A_labels)

    def predict(self, ents_emb, ents, tile=None):
        A_labels = self.users_sensitive[ents]
        _, mse = gender_regression_loss(ents_emb, A_labels, self._params(), tile=tile)
        return mse                            # module's predict returns MSE (no sqrt)


# ---------------------------------------------------------------------------
# Pure-JAX reference for verification.
# ---------------------------------------------------------------------------
def _ref_net(model, x):
    h = x @ model.w1 + model.b1
    h = jnp.where(h > 0, h, 0.1 * h)
    h = h @ model.w2 + model.b2
    h = jnp.where(h > 0, h, 0.1 * h)
    h = h @ model.w3 + model.b3
    h = jnp.where(h > 0, h, 0.1 * h)
    return jnp.sum(h * model.w4t, axis=-1) + model.b4[0, 0]   # (B,)


if __name__ == "__main__":
    key = jax.random.PRNGKey(0)
    kmodel, ksens, kemb, kent, kemb2, kent2 = jax.random.split(key, 6)

    embed_dim, num_users, batch = 128, 200, 16
    users_sensitive = jax.random.uniform(ksens, (num_users,), jnp.float32, 0.0, 1.0)
    model = GenderRegressionOnedim(embed_dim, users_sensitive, kmodel)

    ents_emb = jax.random.normal(kemb, (batch, embed_dim), jnp.float32)
    ents = jax.random.randint(kent, (batch,), 0, num_users)

    # forward(return_loss=True), forward(return_loss=False), predict
    loss1 = model.forward(ents_emb, ents, return_loss=True)
    pred, labels = model.forward(ents_emb, ents, return_loss=False)
    mse_pred = model.predict(ents_emb, ents)
    jax.block_until_ready((loss1, pred, labels, mse_pred))

    ref_out = _ref_net(model, ents_emb)
    ref_labels = users_sensitive[ents]
    ref_mse = jnp.mean((ref_out - ref_labels) ** 2)
    ref_loss1 = jnp.sqrt(ref_mse)

    assert jnp.allclose(pred, ref_out, rtol=1e-4, atol=1e-5)
    assert jnp.allclose(labels, ref_labels)
    assert jnp.allclose(loss1, ref_loss1, rtol=1e-4, atol=1e-5)
    assert jnp.allclose(mse_pred, ref_mse, rtol=1e-4, atol=1e-5)

    # Ragged multi-block grid without any wrapper-side padding: exercises the
    # partial last tile (garbage rows masked in the loss, clipped writeback in
    # the pred path) and the per-tile SSE partial outputs.
    batch2 = 300
    ents_emb2 = jax.random.normal(kemb2, (batch2, embed_dim), jnp.float32)
    ents2 = jax.random.randint(kent2, (batch2,), 0, num_users)
    loss2 = model.forward(ents_emb2, ents2, return_loss=True, tile=128)
    pred2, _ = model.forward(ents_emb2, ents2, return_loss=False, tile=128)
    jax.block_until_ready((loss2, pred2))
    ref_out2 = _ref_net(model, ents_emb2)
    ref_loss2 = jnp.sqrt(jnp.mean((ref_out2 - users_sensitive[ents2]) ** 2))
    assert jnp.allclose(loss2, ref_loss2, rtol=1e-4, atol=1e-5)
    assert jnp.allclose(pred2, ref_out2, rtol=1e-4, atol=1e-5)

    print("KERNEL_OK")
</pallas_src>

<mosaic_0001>
module attributes {stable_mosaic.version = 11 : i64} {
  func.func @_loss_kernel(%arg0: i32, %arg1: memref<16x128xf32, #tpu.memory_space<vmem>>, %arg2: memref<16x1xf32, #tpu.memory_space<vmem>>, %arg3: memref<128x64xf32, #tpu.memory_space<vmem>>, %arg4: memref<1x64xf32, #tpu.memory_space<vmem>>, %arg5: memref<64x32xf32, #tpu.memory_space<vmem>>, %arg6: memref<1x32xf32, #tpu.memory_space<vmem>>, %arg7: memref<32x16xf32, #tpu.memory_space<vmem>>, %arg8: memref<1x16xf32, #tpu.memory_space<vmem>>, %arg9: memref<1x16xf32, #tpu.memory_space<vmem>>, %arg10: memref<1x1xf32, #tpu.memory_space<vmem>>, %arg11: memref<1x8x128xf32, #tpu.memory_space<vmem>>) attributes {dimension_semantics = [#tpu.dimension_semantics<parallel>], iteration_bounds = array<i64: 1>, scalar_prefetch = 0 : i64, scratch_operands = 0 : i64, tpu.core_type = #tpu.core_type<tc>, window_params = [{transform_indices = @transform_0, window_bounds = array<i64: 16, 128>}, {transform_indices = @transform_1, window_bounds = array<i64: 16, 1>}, {pipeline_mode = #tpu.pipeline_mode<synchronous>, transform_indices = @transform_2, window_bounds = array<i64: 128, 64>}, {pipeline_mode = #tpu.pipeline_mode<synchronous>, transform_indices = @transform_3, window_bounds = array<i64: 1, 64>}, {pipeline_mode = #tpu.pipeline_mode<synchronous>, transform_indices = @transform_4, window_bounds = array<i64: 64, 32>}, {pipeline_mode = #tpu.pipeline_mode<synchronous>, transform_indices = @transform_5, window_bounds = array<i64: 1, 32>}, {pipeline_mode = #tpu.pipeline_mode<synchronous>, transform_indices = @transform_6, window_bounds = array<i64: 32, 16>}, {pipeline_mode = #tpu.pipeline_mode<synchronous>, transform_indices = @transform_7, window_bounds = array<i64: 1, 16>}, {pipeline_mode = #tpu.pipeline_mode<synchronous>, transform_indices = @transform_8, window_bounds = array<i64: 1, 16>}, {pipeline_mode = #tpu.pipeline_mode<synchronous>, transform_indices = @transform_9, window_bounds = array<i64: 1, 1>}, {transform_indices = @transform_10, window_bounds = array<i64: 1, 8, 128>}]} {
    %c0 = arith.constant 0 : index
    %c0_0 = arith.constant 0 : index
    %0 = vector.load %arg1[%c0, %c0_0] : memref<16x128xf32, #tpu.memory_space<vmem>>, vector<16x128xf32>
    %c0_1 = arith.constant 0 : index
    %c0_2 = arith.constant 0 : index
    %1 = vector.load %arg3[%c0_1, %c0_2] : memref<128x64xf32, #tpu.memory_space<vmem>>, vector<128x64xf32>
    %c0_3 = arith.constant 0 : index
    %c0_4 = arith.constant 0 : index
    %2 = vector.load %arg4[%c0_3, %c0_4] : memref<1x64xf32, #tpu.memory_space<vmem>>, vector<1x64xf32>
    %c0_5 = arith.constant 0 : index
    %c0_6 = arith.constant 0 : index
    %3 = vector.load %arg5[%c0_5, %c0_6] : memref<64x32xf32, #tpu.memory_space<vmem>>, vector<64x32xf32>
    %c0_7 = arith.constant 0 : index
    %c0_8 = arith.constant 0 : index
    %4 = vector.load %arg6[%c0_7, %c0_8] : memref<1x32xf32, #tpu.memory_space<vmem>>, vector<1x32xf32>
    %c0_9 = arith.constant 0 : index
    %c0_10 = arith.constant 0 : index
    %5 = vector.load %arg7[%c0_9, %c0_10] : memref<32x16xf32, #tpu.memory_space<vmem>>, vector<32x16xf32>
    %c0_11 = arith.constant 0 : index
    %c0_12 = arith.constant 0 : index
    %6 = vector.load %arg8[%c0_11, %c0_12] : memref<1x16xf32, #tpu.memory_space<vmem>>, vector<1x16xf32>
    %c0_13 = arith.constant 0 : index
    %c0_14 = arith.constant 0 : index
    %7 = vector.load %arg9[%c0_13, %c0_14] : memref<1x16xf32, #tpu.memory_space<vmem>>, vector<1x16xf32>
    %c0_15 = arith.constant 0 : index
    %c0_16 = arith.constant 0 : index
    %8 = vector.load %arg10[%c0_15, %c0_16] : memref<1x1xf32, #tpu.memory_space<vmem>>, vector<1x1xf32>
    %cst = arith.constant dense<0.000000e+00> : vector<16x64xf32>
    %9 = tpu.matmul %0, %1, %cst {dimension_numbers = #tpu.dot_dimension_numbers<[1], [0], [0], [1], [0, 0, 1, 1], [], []>} : vector<16x128xf32>, vector<128x64xf32>, vector<16x64xf32> -> vector<16x64xf32>
    %10 = vector.broadcast %2 : vector<1x64xf32> to vector<16x64xf32>
    %11 = arith.addf %9, %10 : vector<16x64xf32>
    %cst_17 = arith.constant 1.000000e-01 : f32
    %12 = vector.broadcast %cst_17 : f32 to vector<16x64xf32>
    %13 = arith.mulf %12, %11 : vector<16x64xf32>
    %14 = arith.maximumf %11, %13 : vector<16x64xf32>
    %cst_18 = arith.constant dense<0.000000e+00> : vector<16x32xf32>
    %15 = tpu.matmul %14, %3, %cst_18 {dimension_numbers = #tpu.dot_dimension_numbers<[1], [0], [0], [1], [0, 0, 1, 1], [], []>} : vector<16x64xf32>, vector<64x32xf32>, vector<16x32xf32> -> vector<16x32xf32>
    %16 = vector.broadcast %4 : vector<1x32xf32> to vector<16x32xf32>
    %17 = arith.addf %15, %16 : vector<16x32xf32>
    %cst_19 = arith.constant 1.000000e-01 : f32
    %18 = vector.broadcast %cst_19 : f32 to vector<16x32xf32>
    %19 = arith.mulf %18, %17 : vector<16x32xf32>
    %20 = arith.maximumf %17, %19 : vector<16x32xf32>
    %cst_20 = arith.constant dense<0.000000e+00> : vector<16x16xf32>
    %21 = tpu.matmul %20, %5, %cst_20 {dimension_numbers = #tpu.dot_dimension_numbers<[1], [0], [0], [1], [0, 0, 1, 1], [], []>} : vector<16x32xf32>, vector<32x16xf32>, vector<16x16xf32> -> vector<16x16xf32>
    %22 = vector.broadcast %6 : vector<1x16xf32> to vector<16x16xf32>
    %23 = arith.addf %21, %22 : vector<16x16xf32>
    %cst_21 = arith.constant 1.000000e-01 : f32
    %24 = vector.broadcast %cst_21 : f32 to vector<16x16xf32>
    %25 = arith.mulf %24, %23 : vector<16x16xf32>
    %26 = arith.maximumf %23, %25 : vector<16x16xf32>
    %27 = vector.broadcast %7 : vector<1x16xf32> to vector<16x16xf32>
    %28 = arith.mulf %26, %27 : vector<16x16xf32>
    %cst_22 = arith.constant dense<0.000000e+00> : vector<16xf32>
    %29 = vector.multi_reduction <add>, %28, %cst_22 [1] : vector<16x16xf32> to vector<16xf32>
    %30 = vector.shape_cast %29 : vector<16xf32> to vector<16x1xf32>
    %31 = vector.broadcast %8 : vector<1x1xf32> to vector<16x1xf32>
    %32 = arith.addf %30, %31 : vector<16x1xf32>
    %33 = tpu.iota {dimensions = array<i32: 0>} : vector<16x1xi32>
    %c16_i32 = arith.constant 16 : i32
    %34 = arith.muli %arg0, %c16_i32 : i32
    %35 = vector.broadcast %34 : i32 to vector<16x1xi32>
    %36 = arith.addi %33, %35 : vector<16x1xi32>
    %c16_i32_23 = arith.constant 16 : i32
    %37 = vector.broadcast %c16_i32_23 : i32 to vector<16x1xi32>
    %38 = arith.cmpi slt, %36, %37 : vector<16x1xi32>
    %c0_24 = arith.constant 0 : index
    %c0_25 = arith.constant 0 : index
    %39 = vector.load %arg2[%c0_24, %c0_25] : memref<16x1xf32, #tpu.memory_space<vmem>>, vector<16x1xf32>
    %40 = arith.subf %32, %39 : vector<16x1xf32>
    %cst_26 = arith.constant 0.000000e+00 : f32
    %41 = vector.broadcast %cst_26 : f32 to vector<16x1xf32>
    %42 = arith.select %38, %40, %41 : vector<16x1xi1>, vector<16x1xf32>
    %43 = arith.mulf %42, %42 : vector<16x1xf32>
    %cst_27 = arith.constant dense<0.000000e+00> : vector<1xf32>
    %44 = vector.multi_reduction <add>, %43, %cst_27 [0] : vector<16x1xf32> to vector<1xf32>
    %45 = vector.shape_cast %44 : vector<1xf32> to vector<1x1xf32>
    %46 = vector.shape_cast %45 : vector<1x1xf32> to vector<1x1x1xf32>
    %47 = vector.shape_cast %46 : vector<1x1x1xf32> to vector<1x1x1xf32>
    %48 = vector.broadcast %47 : vector<1x1x1xf32> to vector<1x8x128xf32>
    %c0_28 = arith.constant 0 : index
    %c0_29 = arith.constant 0 : index
    %c0_30 = arith.constant 0 : index
    %49 = vector.load %arg11[%c0_28, %c0_29, %c0_30] : memref<1x8x128xf32, #tpu.memory_space<vmem>>, vector<1x8x128xf32>
    tpu.vector_store %arg11[%c0_28, %c0_29, %c0_30], %48 {strides = array<i32>} : memref<1x8x128xf32, #tpu.memory_space<vmem>>, vector<1x8x128xf32>,
    return
  }
  func.func @transform_0(%arg0: i32) -> (i32, i32) {
    %c0_i32 = arith.constant 0 : i32
    %c0_i32_0 = arith.constant 0 : i32
    return %arg0, %c0_i32 : i32, i32
  }
  func.func @transform_1(%arg0: i32) -> (i32, i32) {
    %c0_i32 = arith.constant 0 : i32
    %c0_i32_0 = arith.constant 0 : i32
    return %arg0, %c0_i32 : i32, i32
  }
  func.func @transform_2(%arg0: i32) -> (i32, i32) {
    %c0_i32 = arith.constant 0 : i32
    %c0_i32_0 = arith.constant 0 : i32
    %c0_i32_1 = arith.constant 0 : i32
    return %c0_i32, %c0_i32_0 : i32, i32
  }
  func.func @transform_3(%arg0: i32) -> (i32, i32) {
    %c0_i32 = arith.constant 0 : i32
    %c0_i32_0 = arith.constant 0 : i32
    %c0_i32_1 = arith.constant 0 : i32
    return %c0_i32, %c0_i32_0 : i32, i32
  }
  func.func @transform_4(%arg0: i32) -> (i32, i32) {
    %c0_i32 = arith.constant 0 : i32
    %c0_i32_0 = arith.constant 0 : i32
    %c0_i32_1 = arith.constant 0 : i32
    return %c0_i32, %c0_i32_0 : i32, i32
  }
  func.func @transform_5(%arg0: i32) -> (i32, i32) {
    %c0_i32 = arith.constant 0 : i32
    %c0_i32_0 = arith.constant 0 : i32
    %c0_i32_1 = arith.constant 0 : i32
    return %c0_i32, %c0_i32_0 : i32, i32
  }
  func.func @transform_6(%arg0: i32) -> (i32, i32) {
    %c0_i32 = arith.constant 0 : i32
    %c0_i32_0 = arith.constant 0 : i32
    %c0_i32_1 = arith.constant 0 : i32
    return %c0_i32, %c0_i32_0 : i32, i32
  }
  func.func @transform_7(%arg0: i32) -> (i32, i32) {
    %c0_i32 = arith.constant 0 : i32
    %c0_i32_0 = arith.constant 0 : i32
    %c0_i32_1 = arith.constant 0 : i32
    return %c0_i32, %c0_i32_0 : i32, i32
  }
  func.func @transform_8(%arg0: i32) -> (i32, i32) {
    %c0_i32 = arith.constant 0 : i32
    %c0_i32_0 = arith.constant 0 : i32
    %c0_i32_1 = arith.constant 0 : i32
    return %c0_i32, %c0_i32_0 : i32, i32
  }
  func.func @transform_9(%arg0: i32) -> (i32, i32) {
    %c0_i32 = arith.constant 0 : i32
    %c0_i32_0 = arith.constant 0 : i32
    %c0_i32_1 = arith.constant 0 : i32
    return %c0_i32, %c0_i32_0 : i32, i32
  }
  func.func @transform_10(%arg0: i32) -> (i32, i32, i32) {
    %c0_i32 = arith.constant 0 : i32
    %c0_i32_0 = arith.constant 0 : i32
    %c0_i32_1 = arith.constant 0 : i32
    return %arg0, %c0_i32, %c0_i32_0 : i32, i32, i32
  }
}

</mosaic_0001>

<llo_original>
// kernel: tpu_custom_call.1
$region0: #{tpu_custom_call.1}
  #allocation0 [shape = 'u32[]', space=smem, size = 0x4, offset = 0x4, fixed_abs, tag = 'smem constant byte address 0x4 - core index']
  #allocation1 [shape = 'u32[72,128]{1,0:T(1,128)}', space=vmem, size = 0x9000, scoped, tag = 'internal scratch']
  #allocation2 [shape = 'f32[1,1]{1,0:T(1,128)S(1)}', space=vmem, size = 0x200, scoped, tag = 'scoped memory for tpu_custom_call.1']
  %s0 = inlined_call_operand.vmem [shape: f32[16,128], index: 0, kind: input, shape index: {}]
  %s1 = inlined_call_operand.vmem [shape: f32[16,1], index: 1, kind: input, shape index: {}]
  %s2 = inlined_call_operand.vmem [shape: f32[128,64], index: 2, kind: input, shape index: {}]
  %s3 = inlined_call_operand.vmem [shape: f32[1,64], index: 3, kind: input, shape index: {}]
  %s4 = inlined_call_operand.vmem [shape: f32[64,32], index: 4, kind: input, shape index: {}]
  %s5 = inlined_call_operand.vmem [shape: f32[1,32], index: 5, kind: input, shape index: {}]
  %s6 = inlined_call_operand.vmem [shape: f32[32,16], index: 6, kind: input, shape index: {}]
  %s7 = inlined_call_operand.vmem [shape: f32[1,16], index: 7, kind: input, shape index: {}]
  %s8 = inlined_call_operand.vmem [shape: f32[1,16], index: 8, kind: input, shape index: {}]
  %s9 = inlined_call_operand.<no memory space> [shape: f32[1,1], index: 9, kind: input, shape index: {}]
  %s10 = inlined_call_operand.hbm [shape: f32[1,8,128], index: 10, kind: output, shape index: {}]
  %s11 = sld [smem:[#allocation0]]
  $region50: #{tpu_custom_call.1} parent=0
    _
  %s13 = ssub.s32 1, %s11
  %s14 = scalar_select 0, %s13, %s11
  %v15 = vstv %s9
  %16 = vst [vmem:[#allocation2] sm:$0x1] %v15
  $region1: #{tpu_custom_call.1} parent=0
    #allocation3 [shape = 'u8[4096]{0}', space=vmem, size = 0x1000, scoped, tag = 'output window, operand 0, single buffered']
    #allocation4 [shape = 's32[1]{0}', space=sflag, size = 0x4, scoped, tag = 'scoped memory for tpu_custom_call.1']
    %17 = vsyncpa [#allocation4], 0
    // Predicated region
    $region2: #{tpu_custom_call.1} parent=1 // pred_check
      _
    $region3: #{tpu_custom_call.1} parent=1 // pred_check_branch
      %19 = sbr.rel (0) target = $region5
    $region4: #{tpu_custom_call.1} parent=1 // pred_region
      _
    $region5: #{tpu_custom_call.1} parent=1 // pred_fallthru
      _
    // Predicated region
    $region6: #{tpu_custom_call.1} parent=1 // pred_check
      _
    $region7: #{tpu_custom_call.1} parent=1 // pred_check_branch
      %21 = sbr.rel (0) target = $region9
    $region8: #{tpu_custom_call.1} parent=1 // pred_region
      _
    $region9: #{tpu_custom_call.1} parent=1 // pred_fallthru
      _
    // Predicated region
    $region10: #{tpu_custom_call.1} parent=1 // pred_check
      _
    $region11: #{tpu_custom_call.1} parent=1 // pred_check_branch
      %23 = sbr.rel (0) target = $region13
    $region12: #{tpu_custom_call.1} parent=1 // pred_region
      _
    $region13: #{tpu_custom_call.1} parent=1 // pred_fallthru
      _
    // Predicated region
    $region14: #{tpu_custom_call.1} parent=1 // pred_check
      _
    $region15: #{tpu_custom_call.1} parent=1 // pred_check_branch
      %25 = sbr.rel (0) target = $region17
    $region16: #{tpu_custom_call.1} parent=1 // pred_region
      _
    $region17: #{tpu_custom_call.1} parent=1 // pred_fallthru
      _
    // Predicated region
    $region18: #{tpu_custom_call.1} parent=1 // pred_check
      _
    $region19: #{tpu_custom_call.1} parent=1 // pred_check_branch
      %27 = sbr.rel (0) target = $region21
    $region20: #{tpu_custom_call.1} parent=1 // pred_region
      _
    $region21: #{tpu_custom_call.1} parent=1 // pred_fallthru
      _
    // Predicated region
    $region22: #{tpu_custom_call.1} parent=1 // pred_check
      _
    $region23: #{tpu_custom_call.1} parent=1 // pred_check_branch
      %29 = sbr.rel (0) target = $region25
    $region24: #{tpu_custom_call.1} parent=1 // pred_region
      _
    $region25: #{tpu_custom_call.1} parent=1 // pred_fallthru
      _
    // Predicated region
    $region26: #{tpu_custom_call.1} parent=1 // pred_check
      _
    $region27: #{tpu_custom_call.1} parent=1 // pred_check_branch
      %31 = sbr.rel (0) target = $region29
    $region28: #{tpu_custom_call.1} parent=1 // pred_region
      _
    $region29: #{tpu_custom_call.1} parent=1 // pred_fallthru
      _
    // Predicated region
    $region30: #{tpu_custom_call.1} parent=1 // pred_check
      _
    $region31: #{tpu_custom_call.1} parent=1 // pred_check_branch
      %33 = sbr.rel (0) target = $region33
    $region32: #{tpu_custom_call.1} parent=1 // pred_region
      _
    $region33: #{tpu_custom_call.1} parent=1 // pred_fallthru
      _
    // Predicated region
    $region34: #{tpu_custom_call.1} parent=1 // pred_check
      _
    $region35: #{tpu_custom_call.1} parent=1 // pred_check_branch
      %35 = sbr.rel (0) target = $region37
    $region36: #{tpu_custom_call.1} parent=1 // pred_region
      _
    $region37: #{tpu_custom_call.1} parent=1 // pred_fallthru
      _
    // Predicated region
    $region38: #{tpu_custom_call.1} parent=1 // pred_check
      _
    $region39: #{tpu_custom_call.1} parent=1 // pred_check_branch
      %37 = sbr.rel (0) target = $region41
    $region40: #{tpu_custom_call.1} parent=1 // pred_region
      _
    $region41: #{tpu_custom_call.1} parent=1 // pred_fallthru
      _
    %v38 = vld [vmem:[%s0] sm:$0xff]
    %v39 = vld [vmem:[%s0 + $0x8] sm:$0xff]
    %v40 = vld [vmem:[%s2] sm:$0xff]
    %v41 = vld [vmem:[%s2 + $0x8] sm:$0xff]
    %v42 = vld [vmem:[%s2 + $0x10] sm:$0xff]
    %v43 = vld [vmem:[%s2 + $0x18] sm:$0xff]
    %v44 = vld [vmem:[%s2 + $0x20] sm:$0xff]
    %v45 = vld [vmem:[%s2 + $0x28] sm:$0xff]
    %v46 = vld [vmem:[%s2 + $0x30] sm:$0xff]
    %v47 = vld [vmem:[%s2 + $0x38] sm:$0xff]
    %v48 = vld [vmem:[%s2 + $0x40] sm:$0xff]
    %v49 = vld [vmem:[%s2 + $0x48] sm:$0xff]
    %v50 = vld [vmem:[%s2 + $0x50] sm:$0xff]
    %v51 = vld [vmem:[%s2 + $0x58] sm:$0xff]
    %v52 = vld [vmem:[%s2 + $0x60] sm:$0xff]
    %v53 = vld [vmem:[%s2 + $0x68] sm:$0xff]
    %v54 = vld [vmem:[%s2 + $0x70] sm:$0xff]
    %v55 = vld [vmem:[%s2 + $0x78] sm:$0xff]
    %v56 = vld [vmem:[%s3] sm:$0x1]
    %v57 = vld [vmem:[%s4] sm:$0xff]
    %v58 = vld [vmem:[%s4 + $0x8] sm:$0xff]
    %v59 = vld [vmem:[%s4 + $0x10] sm:$0xff]
    %v60 = vld [vmem:[%s4 + $0x18] sm:$0xff]
    %v61 = vld [vmem:[%s4 + $0x20] sm:$0xff]
    %v62 = vld [vmem:[%s4 + $0x28] sm:$0xff]
    %v63 = vld [vmem:[%s4 + $0x30] sm:$0xff]
    %v64 = vld [vmem:[%s4 + $0x38] sm:$0xff]
    %v65 = vld [vmem:[%s5] sm:$0x1]
    %v66 = vld [vmem:[%s6] sm:$0xff]
    %v67 = vld [vmem:[%s6 + $0x8] sm:$0xff]
    %v68 = vld [vmem:[%s6 + $0x10] sm:$0xff]
    %v69 = vld [vmem:[%s6 + $0x18] sm:$0xff]
    %v70 = vld [vmem:[%s7] sm:$0x1]
    %v71 = vld [vmem:[%s8] sm:$0x1]
    %v72 = vld [vmem:[#allocation2] sm:$0x1]
    %v74 = vperm.slane %v56, 0
    %76 = vmatpush.msra.mxu0 %v55
    %77 = vmatpush.msra.mxu0 %v54
    %78 = vmatpush.msra.mxu0 %v53
    %79 = vmatpush.msra.mxu0 %v52
    %80 = vmatpush.msra.mxu0 %v51
    %81 = vmatpush.msra.mxu0 %v50
    %82 = vmatpush.msra.mxu0 %v49
    %83 = vmatpush.msra.mxu0 %v48
    %84 = vmatpush.msra.mxu0 %v47
    %85 = vmatpush.msra.mxu0 %v46
    %86 = vmatpush.msra.mxu0 %v45
    %87 = vmatpush.msra.mxu0 %v44
    %88 = vmatpush.msra.mxu0 %v43
    %89 = vmatpush.msra.mxu0 %v42
    %90 = vmatpush.msra.mxu0 %v41
    %91 = vmatpush.msra.mxu0 %v40
    %92 = vmatmul.f32.gmra.mxu0 %v38
    %v93 = vpop.f32.mrf.mxu0
    %v94 = vadd.f32 %v74, %v93
    %95 = vmatmul.f32.gmra.mxu0 %v39
    %v96 = vpop.f32.mrf.mxu0
    %v97 = vadd.f32 %v74, %v96
    %98 = vdwg.mxu0
    %v99 = vmul.f32 %v94, 0.1
    %v100 = vmul.f32 %v97, 0.1
    %v101 = vmax.f32 %v94, %v99
    %v102 = vmax.f32 %v97, %v100
    %v104 = vperm.slane %v65, 0
    %vm106 = vcmask 523264
    %v108 = vsel %vm106, %v101, 0
    %v111 = vsel %vm106, %v102, 0
    %113 = vmatpush.msra.mxu0 0.0
    %114 = vmatpush.msra.mxu0 0.0
    %115 = vmatpush.msra.mxu0 0.0
    %116 = vmatpush.msra.mxu0 0.0
    %117 = vmatpush.msra.mxu0 0.0
    %118 = vmatpush.msra.mxu0 0.0
    %119 = vmatpush.msra.mxu0 0.0
    %120 = vmatpush.msra.mxu0 0.0
    %121 = vmatpush.msra.mxu0 %v64
    %122 = vmatpush.msra.mxu0 %v63
    %123 = vmatpush.msra.mxu0 %v62
    %124 = vmatpush.msra.mxu0 %v61
    %125 = vmatpush.msra.mxu0 %v60
    %126 = vmatpush.msra.mxu0 %v59
    %127 = vmatpush.msra.mxu0 %v58
    %128 = vmatpush.msra.mxu0 %v57
    %129 = vmatmul.f32.gmra.mxu0 %v108
    %v130 = vpop.f32.mrf.mxu0
    %v131 = vadd.f32 %v104, %v130
    %132 = vmatmul.f32.gmra.mxu0 %v111
    %v133 = vpop.f32.mrf.mxu0
    %v134 = vadd.f32 %v104, %v133
    %135 = vdwg.mxu0
    %v136 = vmul.f32 %v131, 0.1
    %v137 = vmul.f32 %v134, 0.1
    %v138 = vmax.f32 %v131, %v136
    %v139 = vmax.f32 %v134, %v137
    %v141 = vperm.slane %v70, 0
    %vm143 = vcmask 261120
    %v145 = vsel %vm143, %v138, 0
    %v148 = vsel %vm143, %v139, 0
    %150 = vmatpush.msra.mxu0 0.0
    %151 = vmatpush.msra.mxu0 0.0
    %152 = vmatpush.msra.mxu0 0.0
    %153 = vmatpush.msra.mxu0 0.0
    %154 = vmatpush.msra.mxu0 0.0
    %155 = vmatpush.msra.mxu0 0.0
    %156 = vmatpush.msra.mxu0 0.0
    %157 = vmatpush.msra.mxu0 0.0
    %158 = vmatpush.msra.mxu0 0.0
    %159 = vmatpush.msra.mxu0 0.0
    %160 = vmatpush.msra.mxu0 0.0
    %161 = vmatpush.msra.mxu0 0.0
    %162 = vmatpush.msra.mxu0 %v69
    %163 = vmatpush.msra.mxu0 %v68
    %164 = vmatpush.msra.mxu0 %v67
    %165 = vmatpush.msra.mxu0 %v66
    %166 = vmatmul.f32.gmra.mxu0 %v145
    %v167 = vpop.f32.mrf.mxu0
    %v168 = vadd.f32 %v141, %v167
    %169 = vmatmul.f32.gmra.mxu0 %v148
    %v170 = vpop.f32.mrf.mxu0
    %v171 = vadd.f32 %v141, %v170
    %172 = vdwg.mxu0
    %v173 = vmul.f32 %v168, 0.1
    %v174 = vmul.f32 %v171, 0.1
    %v175 = vmax.f32 %v168, %v173
    %v176 = vmax.f32 %v171, %v174
    %v178 = vperm.slane %v71, 0
    %v180 = vmul.f32 %v175, %v178
    %v181 = vmul.f32 %v176, %v178
    %vm182 = vcmask 130048
    %v183 = vsel %vm182, %v180, 0.0
    %184 = vadd.xlane.f32.xlu0 %v183
    %v185 = vpop.xlane.xlu0 %184
    %v186 = vsel %vm182, %v181, 0.0
    %187 = vadd.xlane.f32.xlu0 %v186
    %v188 = vpop.xlane.xlu0 %187
    %v190 = vperm.slane %v72, 0
    %v192 = vadd.f32 %v185, %v190
    %v193 = vadd.f32 %v188, %v190
    %v194 = vlaneseq
    %v195 = vshrl.u32 %v194, 7
    %v196 = vadd.s32 %v195, 8
    %s197 = smul.u32 0, 16
    %v198 = vstv %s197
    %v199 = vadd.s32 %v195, %v198
    %v200 = vadd.s32 %v196, %v198
    %vm201 = vcmp.lt.s32.totalorder %v199, 16
    %vm202 = vcmp.lt.s32.totalorder %v200, 16
    %v203 = vld [vmem:[%s1] sm:$0xff]
    %v204 = vld [vmem:[%s1 + $0x8] sm:$0xff]
    %v205 = vsub.f32 %v192, %v203
    %v206 = vsub.f32 %v193, %v204
    %v207 = vsel %vm201, %v205, 0.0
    %v208 = vsel %vm202, %v206, 0.0
    %v209 = vmul.f32 %v207, %v207
    %v210 = vmul.f32 %v208, %v208
    %vm211 = vcmask 7168
    %v212 = vsel %vm211, %v209, 0.0
    %v213 = vsel %vm211, %v210, 0.0
    %v214 = vadd.f32 %v212, %v213
    %v215 = vrot.slane %v214, 4
    %v216 = vadd.f32 %v214, %v215
    %v217 = vrot.slane %v216, 2
    %v218 = vadd.f32 %v216, %v217
    %v219 = vrot.slane %v218, 1
    %v220 = vadd.f32 %v218, %v219
    %222 = vset.pattern.permute.xlu0 0
    %223 = vperm.xlu0 %222, %v220
    %v224 = vpop.permute.xlu0 %223
    %226 = vst [vmem:[#allocation3] sm:$0xff] %v224
    // Predicated region
    $region42: #{tpu_custom_call.1} parent=1 // pred_check
      _
    $region43: #{tpu_custom_call.1} parent=1 // pred_check_branch
      %228 = sbr.rel (0) target = $region45
    $region44: #{tpu_custom_call.1} parent=1 // pred_region
      %230 = vsyncadd [#allocation4], 0
      %s232 = sshll.u32 [#allocation3], 4
      %s233 = int_to_ptr.vmem [resolvable:$true] %s232
      %s234 = sshll.u32 %s10, 4
      %s235 = int_to_ptr.hbm [resolvable:$true] %s234
      %237 = dma.vmem_to_hbm [thread:$0]  %s233, 128, %s235, [#allocation4]
    $region45: #{tpu_custom_call.1} parent=1 // pred_fallthru
      _
    // Predicated region
    $region46: #{tpu_custom_call.1} parent=1 // pred_check
      _
    $region47: #{tpu_custom_call.1} parent=1 // pred_check_branch
      %239 = sbr.rel (0) target = $region49
    $region48: #{tpu_custom_call.1} parent=1 // pred_region
      %241 = dma.done [#allocation4], 128
    $region49: #{tpu_custom_call.1} parent=1 // pred_fallthru
      _
    %242 = vsyncpa [#allocation4], 1

</llo_original>
